<compile_context>
chip_gen: v7x
topology: tpu7x:2x2x1
jax: 0.10.0
libtpu: 0.0.40
codegen_flags: <defaults>
</compile_context>

<pallas_src>
import functools

import jax
import jax.numpy as jnp
from jax import lax
from jax.experimental import pallas as pl
from jax.experimental.pallas import tpu as pltpu

_LANE = 128
_NEG_BIG = -1e30     # padded-vocab bias -> exp() == 0 in the log-softmax
_UNROLL_LIMIT = 64   # above this many serial steps, use fori_loop(unroll=8)


def _round_up(x, m):
    return (x + m - 1) // m * m


def _rnn_readout_kernel(x_ref, wih_t_ref, whh_t_ref, b_ref, h0_ref,
                        wlin_s_hbm, wlin_q_hbm, blin_ref, out_ref,
                        pre_ref, wlin_s_vmem, wlin_q_vmem, lin_sem,
                        *, n_story, n_quest):
    """Fused story+question Elman RNN + split-weight linear readout + log-softmax.

    x_ref        (2*L, E)  interleaved rows [story_t, quest_t], t = 0..L-1
    wih_t_ref    (E,  Hp)  W_ih^T (lane-padded H)                      [VMEM]
    whh_t_ref    (Hp, Hp)  W_hh^T                                      [VMEM]
    b_ref        (1,  Hp)  b_ih + b_hh                                 [VMEM]
    h0_ref       (2,  Hp)  [h0_story ; h0_quest]                       [VMEM]
    wlin_*_hbm   (Hp, Vp)  halves of W_lin^T (story / question cols)   [HBM]
    blin_ref     (1,  Vp)  readout bias, padded lanes = -1e30          [VMEM]
    out_ref      (1,  Vp)  log-probabilities (real vocab in [:, :V])
    pre_ref      (2L, Hp)  VMEM scratch for the hoisted input projection
    wlin_*_vmem  (Hp, Vp)  VMEM landing buffers for the readout weights
    lin_sem      (2,)      DMA semaphores for the readout-weight copies
    """
    n_min = min(n_story, n_quest)
    n_max = max(n_story, n_quest)

    # Kick off the readout-weight DMA immediately; the recurrence never
    # touches w_lin, so the HBM->VMEM fetch hides behind the serial steps.
    cp_s = pltpu.make_async_copy(wlin_s_hbm, wlin_s_vmem, lin_sem.at[0])
    cp_q = pltpu.make_async_copy(wlin_q_hbm, wlin_q_vmem, lin_sem.at[1])
    cp_s.start()
    cp_q.start()

    whh_t = whh_t_ref[...]

    # Hoisted input projection: one well-shaped matmul off the critical path.
    # pre[2t] / pre[2t+1] hold x_t @ W_ih^T + (b_ih + b_hh) for story / quest.
    pre_ref[...] = (jnp.dot(x_ref[...], wih_t_ref[...],
                            preferred_element_type=jnp.float32)
                    + b_ref[...])

    def fused_step(t, h):                                    # h: (2, Hp) f32
        pre_t = pre_ref[pl.ds(2 * t, 2), :]
        return jnp.tanh(pre_t + jnp.dot(h, whh_t,
                                        preferred_element_type=jnp.float32))

    # Phase 1: fused steps over the common prefix (both rows advance).
    h = h0_ref[...]                                          # (2, Hp) f32
    if n_min > _UNROLL_LIMIT:
        h = lax.fori_loop(0, n_min, fused_step, h, unroll=8)
    else:
        for t in range(n_min):
            h = fused_step(t, h)

    # Phase 2: finish the longer sequence on a single (1, Hp) row; the other
    # row is held aside untouched (no per-step concatenate / select).
    if n_story == n_quest:
        hs, hq = h[0:1, :], h[1:2, :]
    else:
        tail_row = 0 if n_story > n_quest else 1
        hr = h[tail_row:tail_row + 1, :]                     # (1, Hp)

        def tail_step(t, hr):
            pre_t = pre_ref[pl.ds(2 * t + tail_row, 1), :]
            return jnp.tanh(pre_t + jnp.dot(hr, whh_t,
                                            preferred_element_type=jnp.float32))

        if (n_max - n_min) > _UNROLL_LIMIT:
            hr = lax.fori_loop(n_min, n_max, tail_step, hr, unroll=8)
        else:
            for t in range(n_min, n_max):
                hr = tail_step(t, hr)

        if tail_row == 0:
            hs, hq = hr, h[1:2, :]
        else:
            hs, hq = h[0:1, :], hr

    # Readout: wait for the overlapped weight DMA only now.
    cp_s.wait()
    cp_q.wait()
    logits = (jnp.dot(hs, wlin_s_vmem[...], preferred_element_type=jnp.float32)
              + jnp.dot(hq, wlin_q_vmem[...], preferred_element_type=jnp.float32)
              + blin_ref[...])                               # (1, Vp) f32

    # LogSoftmax over the vocabulary vector (f32).  Padded lanes carry a
    # -1e30 bias, so exp(pad - m) == 0 and the real entries are unaffected.
    m = jnp.max(logits, axis=-1, keepdims=True)
    lse = jnp.log(jnp.sum(jnp.exp(logits - m), axis=-1, keepdims=True)) + m
    out_ref[...] = logits - lse


def prepare_params(params):
    """One-time weight prep: transpose + lane-pad H/V to multiples of 128.
    Everything stays f32 (latency-bound recurrence; v5e-safe)."""
    H = params["w_hh"].shape[0]
    E = params["w_ih"].shape[1]
    V = params["w_lin"].shape[0]
    Hp = _round_up(H, _LANE)
    Vp = _round_up(V, _LANE)

    def pad_to(a, rows, cols, value=0.0):
        return jnp.pad(a, ((0, rows - a.shape[0]), (0, cols - a.shape[1])),
                       constant_values=value).astype(jnp.float32)

    b = (params["b_ih"] + params["b_hh"]).reshape(1, H)
    h0 = jnp.concatenate([params["h0_story"].reshape(1, H),
                          params["h0_quest"].reshape(1, H)], axis=0)

    return {
        "embedding": params["embedding"],
        "w_ih_t": pad_to(params["w_ih"].T, E, Hp),
        "w_hh_t": pad_to(params["w_hh"].T, Hp, Hp),
        "b": pad_to(b, 1, Hp),
        "h0": pad_to(h0, 2, Hp),
        "w_lin_s_t": pad_to(params["w_lin"][:, :H].T, Hp, Vp),
        "w_lin_q_t": pad_to(params["w_lin"][:, H:].T, Hp, Vp),
        "b_lin": pad_to(params["b_lin"].reshape(1, V), 1, Vp, value=_NEG_BIG),
        "vocab_size": V,
    }


def my_model2_forward(prepped, story, quest):
    """story, quest: 1-D int32 index arrays -> (V,) log-probabilities."""
    # Embedding gather kept as XLA glue (tiny at these sizes).
    # TODO(synk): at production vocab/seq sizes, move the gather into the
    # kernel via PrefetchScalarGridSpec-prefetched indices.
    xs = jnp.take(prepped["embedding"], story, axis=0)       # (Ls, E)
    xq = jnp.take(prepped["embedding"], quest, axis=0)       # (Lq, E)
    Ls, Lq = int(xs.shape[0]), int(xq.shape[0])
    L = max(Ls, Lq)
    E = xs.shape[1]
    if Ls < L:
        xs = jnp.pad(xs, ((0, L - Ls), (0, 0)))
    if Lq < L:
        xq = jnp.pad(xq, ((0, L - Lq), (0, 0)))
    # Interleave so the kernel reads a contiguous (2, Hp) block per step.
    x = jnp.stack([xs, xq], axis=1).reshape(2 * L, E).astype(jnp.float32)

    Hp = prepped["w_hh_t"].shape[0]
    Vp = prepped["w_lin_s_t"].shape[1]
    V = prepped["vocab_size"]

    kernel = functools.partial(_rnn_readout_kernel, n_story=Ls, n_quest=Lq)
    vmem = pl.BlockSpec(memory_space=pltpu.MemorySpace.VMEM)
    hbm = pl.BlockSpec(memory_space=pl.ANY)
    out = pl.pallas_call(
        kernel,
        out_shape=jax.ShapeDtypeStruct((1, Vp), jnp.float32),
        in_specs=[vmem, vmem, vmem, vmem, vmem, hbm, hbm, vmem],
        out_specs=vmem,
        scratch_shapes=[
            pltpu.VMEM((2 * L, Hp), jnp.float32),   # hoisted input projection
            pltpu.VMEM((Hp, Vp), jnp.float32),      # w_lin (story) landing buf
            pltpu.VMEM((Hp, Vp), jnp.float32),      # w_lin (quest) landing buf
            pltpu.SemaphoreType.DMA((2,)),          # readout-weight DMA sems
        ],
    )(x, prepped["w_ih_t"], prepped["w_hh_t"], prepped["b"], prepped["h0"],
      prepped["w_lin_s_t"], prepped["w_lin_q_t"], prepped["b_lin"])
    return out[0, :V]


def my_model2_reference(params, story, quest):
    """Pure-JAX reference mirroring the PyTorch forward (for validation)."""
    emb = params["embedding"]
    H = params["w_hh"].shape[0]
    hp = lax.Precision.HIGHEST   # match the kernel's f32 MXU accumulation

    def run_rnn(x, h0):
        def step(h, x_t):
            h_new = jnp.tanh(jnp.dot(x_t, params["w_ih"].T, precision=hp)
                             + params["b_ih"]
                             + jnp.dot(h, params["w_hh"].T, precision=hp)
                             + params["b_hh"])
            return h_new, h_new
        h_last, _ = lax.scan(step, h0, x)
        return h_last

    hs = run_rnn(jnp.take(emb, story, axis=0), params["h0_story"].reshape(H))
    hq = run_rnn(jnp.take(emb, quest, axis=0), params["h0_quest"].reshape(H))
    out = (jnp.dot(jnp.concatenate([hs, hq]), params["w_lin"].T, precision=hp)
           + params["b_lin"])
    m = jnp.max(out)
    return out - (m + jnp.log(jnp.sum(jnp.exp(out - m))))


def init_params(key, vocab_size, embedding_size, hidden_size):
    ks = jax.random.split(key, 9)
    bound = 1.0 / jnp.sqrt(hidden_size)
    return {
        "embedding": jax.random.normal(ks[0], (vocab_size, embedding_size), jnp.float32),
        "w_ih": jax.random.uniform(ks[1], (hidden_size, embedding_size), jnp.float32, -bound, bound),
        "w_hh": jax.random.uniform(ks[2], (hidden_size, hidden_size), jnp.float32, -bound, bound),
        "b_ih": jax.random.uniform(ks[3], (hidden_size,), jnp.float32, -bound, bound),
        "b_hh": jax.random.uniform(ks[4], (hidden_size,), jnp.float32, -bound, bound),
        "w_lin": jax.random.uniform(ks[5], (vocab_size, 2 * hidden_size), jnp.float32, -bound, bound),
        "b_lin": jax.random.uniform(ks[6], (vocab_size,), jnp.float32, -bound, bound),
        "h0_story": jax.random.normal(ks[7], (1, 1, hidden_size), jnp.float32),
        "h0_quest": jax.random.normal(ks[8], (1, 1, hidden_size), jnp.float32),
    }


if __name__ == "__main__":
    vocab_size, embedding_size, hidden_size = 32, 16, 32
    story_len, quest_len = 8, 8

    key = jax.random.PRNGKey(0)
    k_par, k_story, k_quest = jax.random.split(key, 3)
    params = init_params(k_par, vocab_size, embedding_size, hidden_size)
    prepped = prepare_params(params)   # one-time transpose / pad

    story = jax.random.randint(k_story, (story_len,), 0, vocab_size, jnp.int32)
    quest = jax.random.randint(k_quest, (quest_len,), 0, vocab_size, jnp.int32)

    out = jax.block_until_ready(my_model2_forward(prepped, story, quest))
    ref = jax.block_until_ready(my_model2_reference(params, story, quest))
    assert out.shape == (vocab_size,)
    assert jnp.allclose(out, ref, atol=5e-5, rtol=5e-5), (out, ref)

    # Unequal-length check exercises the two-phase (tail) recurrence path.
    quest_short = quest[:5]
    out2 = jax.block_until_ready(my_model2_forward(prepped, story, quest_short))
    ref2 = jax.block_until_ready(my_model2_reference(params, story, quest_short))
    assert jnp.allclose(out2, ref2, atol=5e-5, rtol=5e-5), (out2, ref2)

    print("KERNEL_OK")
</pallas_src>

<mosaic_0001>
module attributes {stable_mosaic.version = 11 : i64} {
  func.func @_rnn_readout_kernel(%arg0: memref<16x16xf32, #tpu.memory_space<vmem>>, %arg1: memref<16x128xf32, #tpu.memory_space<vmem>>, %arg2: memref<128x128xf32, #tpu.memory_space<vmem>>, %arg3: memref<1x128xf32, #tpu.memory_space<vmem>>, %arg4: memref<2x128xf32, #tpu.memory_space<vmem>>, %arg5: memref<128x128xf32, #tpu.memory_space<any>>, %arg6: memref<128x128xf32, #tpu.memory_space<any>>, %arg7: memref<1x128xf32, #tpu.memory_space<vmem>>, %arg8: memref<1x128xf32, #tpu.memory_space<vmem>>, %arg9: memref<16x128xf32, #tpu.memory_space<vmem>>, %arg10: memref<128x128xf32, #tpu.memory_space<vmem>>, %arg11: memref<128x128xf32, #tpu.memory_space<vmem>>, %arg12: memref<2x!tpu.dma_semaphore, #tpu.memory_space<semaphore_mem>>) attributes {dimension_semantics = [], scalar_prefetch = 0 : i64, scratch_operands = 4 : i64, tpu.core_type = #tpu.core_type<tc>} {
    %c0_i32 = arith.constant 0 : i32
    %0 = tpu.memref_slice %arg12[%c0_i32] : memref<2x!tpu.dma_semaphore, #tpu.memory_space<semaphore_mem>> -> memref<1x!tpu.dma_semaphore, #tpu.memory_space<semaphore_mem>>
    %1 = tpu.memref_squeeze %0 : memref<1x!tpu.dma_semaphore, #tpu.memory_space<semaphore_mem>> -> memref<!tpu.dma_semaphore, #tpu.memory_space<semaphore_mem>>
    tpu.enqueue_dma source(%arg5 : memref<128x128xf32, #tpu.memory_space<any>>) target(%arg10 : memref<128x128xf32, #tpu.memory_space<vmem>>) target_semaphore(%1 : memref<!tpu.dma_semaphore, #tpu.memory_space<semaphore_mem>>)
    %c1_i32 = arith.constant 1 : i32
    %2 = tpu.memref_slice %arg12[%c1_i32] : memref<2x!tpu.dma_semaphore, #tpu.memory_space<semaphore_mem>> -> memref<1x!tpu.dma_semaphore, #tpu.memory_space<semaphore_mem>>
    %3 = tpu.memref_squeeze %2 : memref<1x!tpu.dma_semaphore, #tpu.memory_space<semaphore_mem>> -> memref<!tpu.dma_semaphore, #tpu.memory_space<semaphore_mem>>
    tpu.enqueue_dma source(%arg6 : memref<128x128xf32, #tpu.memory_space<any>>) target(%arg11 : memref<128x128xf32, #tpu.memory_space<vmem>>) target_semaphore(%3 : memref<!tpu.dma_semaphore, #tpu.memory_space<semaphore_mem>>)
    %c0 = arith.constant 0 : index
    %c0_0 = arith.constant 0 : index
    %4 = vector.load %arg2[%c0, %c0_0] : memref<128x128xf32, #tpu.memory_space<vmem>>, vector<128x128xf32>
    %c0_1 = arith.constant 0 : index
    %c0_2 = arith.constant 0 : index
    %5 = vector.load %arg0[%c0_1, %c0_2] : memref<16x16xf32, #tpu.memory_space<vmem>>, vector<16x16xf32>
    %c0_3 = arith.constant 0 : index
    %c0_4 = arith.constant 0 : index
    %6 = vector.load %arg1[%c0_3, %c0_4] : memref<16x128xf32, #tpu.memory_space<vmem>>, vector<16x128xf32>
    %cst = arith.constant dense<0.000000e+00> : vector<16x128xf32>
    %7 = tpu.matmul %5, %6, %cst {dimension_numbers = #tpu.dot_dimension_numbers<[1], [0], [0], [1], [0, 0, 1, 1], [], []>} : vector<16x16xf32>, vector<16x128xf32>, vector<16x128xf32> -> vector<16x128xf32>
    %c0_5 = arith.constant 0 : index
    %c0_6 = arith.constant 0 : index
    %8 = vector.load %arg3[%c0_5, %c0_6] : memref<1x128xf32, #tpu.memory_space<vmem>>, vector<1x128xf32>
    %9 = vector.broadcast %8 : vector<1x128xf32> to vector<16x128xf32>
    %10 = arith.addf %7, %9 : vector<16x128xf32>
    %c0_7 = arith.constant 0 : index
    %c0_8 = arith.constant 0 : index
    %11 = vector.load %arg9[%c0_7, %c0_8] : memref<16x128xf32, #tpu.memory_space<vmem>>, vector<16x128xf32>
    tpu.vector_store %arg9[%c0_7, %c0_8], %10 {strides = array<i32>} : memref<16x128xf32, #tpu.memory_space<vmem>>, vector<16x128xf32>,
    %c0_9 = arith.constant 0 : index
    %c0_10 = arith.constant 0 : index
    %12 = vector.load %arg4[%c0_9, %c0_10] : memref<2x128xf32, #tpu.memory_space<vmem>>, vector<2x128xf32>
    %c0_11 = arith.constant 0 : index
    %c0_12 = arith.constant 0 : index
    %13 = vector.load %arg9[%c0_11, %c0_12] : memref<16x128xf32, #tpu.memory_space<vmem>>, vector<2x128xf32>
    %cst_13 = arith.constant dense<0.000000e+00> : vector<2x128xf32>
    %14 = tpu.matmul %12, %4, %cst_13 {dimension_numbers = #tpu.dot_dimension_numbers<[1], [0], [0], [1], [0, 0, 1, 1], [], []>} : vector<2x128xf32>, vector<128x128xf32>, vector<2x128xf32> -> vector<2x128xf32>
    %15 = arith.addf %13, %14 : vector<2x128xf32>
    %16 = math.tanh %15 : vector<2x128xf32>
    %c2 = arith.constant 2 : index
    %c0_14 = arith.constant 0 : index
    %17 = vector.load %arg9[%c2, %c0_14] : memref<16x128xf32, #tpu.memory_space<vmem>>, vector<2x128xf32>
    %cst_15 = arith.constant dense<0.000000e+00> : vector<2x128xf32>
    %18 = tpu.matmul %16, %4, %cst_15 {dimension_numbers = #tpu.dot_dimension_numbers<[1], [0], [0], [1], [0, 0, 1, 1], [], []>} : vector<2x128xf32>, vector<128x128xf32>, vector<2x128xf32> -> vector<2x128xf32>
    %19 = arith.addf %17, %18 : vector<2x128xf32>
    %20 = math.tanh %19 : vector<2x128xf32>
    %c4 = arith.constant 4 : index
    %c0_16 = arith.constant 0 : index
    %21 = vector.load %arg9[%c4, %c0_16] : memref<16x128xf32, #tpu.memory_space<vmem>>, vector<2x128xf32>
    %cst_17 = arith.constant dense<0.000000e+00> : vector<2x128xf32>
    %22 = tpu.matmul %20, %4, %cst_17 {dimension_numbers = #tpu.dot_dimension_numbers<[1], [0], [0], [1], [0, 0, 1, 1], [], []>} : vector<2x128xf32>, vector<128x128xf32>, vector<2x128xf32> -> vector<2x128xf32>
    %23 = arith.addf %21, %22 : vector<2x128xf32>
    %24 = math.tanh %23 : vector<2x128xf32>
    %c6 = arith.constant 6 : index
    %c0_18 = arith.constant 0 : index
    %25 = vector.load %arg9[%c6, %c0_18] : memref<16x128xf32, #tpu.memory_space<vmem>>, vector<2x128xf32>
    %cst_19 = arith.constant dense<0.000000e+00> : vector<2x128xf32>
    %26 = tpu.matmul %24, %4, %cst_19 {dimension_numbers = #tpu.dot_dimension_numbers<[1], [0], [0], [1], [0, 0, 1, 1], [], []>} : vector<2x128xf32>, vector<128x128xf32>, vector<2x128xf32> -> vector<2x128xf32>
    %27 = arith.addf %25, %26 : vector<2x128xf32>
    %28 = math.tanh %27 : vector<2x128xf32>
    %c8 = arith.constant 8 : index
    %c0_20 = arith.constant 0 : index
    %29 = vector.load %arg9[%c8, %c0_20] : memref<16x128xf32, #tpu.memory_space<vmem>>, vector<2x128xf32>
    %cst_21 = arith.constant dense<0.000000e+00> : vector<2x128xf32>
    %30 = tpu.matmul %28, %4, %cst_21 {dimension_numbers = #tpu.dot_dimension_numbers<[1], [0], [0], [1], [0, 0, 1, 1], [], []>} : vector<2x128xf32>, vector<128x128xf32>, vector<2x128xf32> -> vector<2x128xf32>
    %31 = arith.addf %29, %30 : vector<2x128xf32>
    %32 = math.tanh %31 : vector<2x128xf32>
    %c10 = arith.constant 10 : index
    %c0_22 = arith.constant 0 : index
    %33 = vector.load %arg9[%c10, %c0_22] : memref<16x128xf32, #tpu.memory_space<vmem>>, vector<2x128xf32>
    %cst_23 = arith.constant dense<0.000000e+00> : vector<2x128xf32>
    %34 = tpu.matmul %32, %4, %cst_23 {dimension_numbers = #tpu.dot_dimension_numbers<[1], [0], [0], [1], [0, 0, 1, 1], [], []>} : vector<2x128xf32>, vector<128x128xf32>, vector<2x128xf32> -> vector<2x128xf32>
    %35 = arith.addf %33, %34 : vector<2x128xf32>
    %36 = math.tanh %35 : vector<2x128xf32>
    %c12 = arith.constant 12 : index
    %c0_24 = arith.constant 0 : index
    %37 = vector.load %arg9[%c12, %c0_24] : memref<16x128xf32, #tpu.memory_space<vmem>>, vector<2x128xf32>
    %cst_25 = arith.constant dense<0.000000e+00> : vector<2x128xf32>
    %38 = tpu.matmul %36, %4, %cst_25 {dimension_numbers = #tpu.dot_dimension_numbers<[1], [0], [0], [1], [0, 0, 1, 1], [], []>} : vector<2x128xf32>, vector<128x128xf32>, vector<2x128xf32> -> vector<2x128xf32>
    %39 = arith.addf %37, %38 : vector<2x128xf32>
    %40 = math.tanh %39 : vector<2x128xf32>
    %c14 = arith.constant 14 : index
    %c0_26 = arith.constant 0 : index
    %41 = vector.load %arg9[%c14, %c0_26] : memref<16x128xf32, #tpu.memory_space<vmem>>, vector<2x128xf32>
    %cst_27 = arith.constant dense<0.000000e+00> : vector<2x128xf32>
    %42 = tpu.matmul %40, %4, %cst_27 {dimension_numbers = #tpu.dot_dimension_numbers<[1], [0], [0], [1], [0, 0, 1, 1], [], []>} : vector<2x128xf32>, vector<128x128xf32>, vector<2x128xf32> -> vector<2x128xf32>
    %43 = arith.addf %41, %42 : vector<2x128xf32>
    %44 = math.tanh %43 : vector<2x128xf32>
    %45 = vector.extract_strided_slice %44 {offsets = [0, 0], sizes = [1, 128], strides = [1, 1]} : vector<2x128xf32> to vector<1x128xf32>
    %46 = vector.extract_strided_slice %44 {offsets = [1, 0], sizes = [1, 128], strides = [1, 1]} : vector<2x128xf32> to vector<1x128xf32>
    %c0_i32_28 = arith.constant 0 : i32
    %47 = tpu.memref_slice %arg12[%c0_i32_28] : memref<2x!tpu.dma_semaphore, #tpu.memory_space<semaphore_mem>> -> memref<1x!tpu.dma_semaphore, #tpu.memory_space<semaphore_mem>>
    %48 = tpu.memref_squeeze %47 : memref<1x!tpu.dma_semaphore, #tpu.memory_space<semaphore_mem>> -> memref<!tpu.dma_semaphore, #tpu.memory_space<semaphore_mem>>
    tpu.wait_dma2 semaphore(%48 : memref<!tpu.dma_semaphore, #tpu.memory_space<semaphore_mem>>) src(%arg5 : memref<128x128xf32, #tpu.memory_space<any>>) dst(%arg10 : memref<128x128xf32, #tpu.memory_space<vmem>>)
    %c1_i32_29 = arith.constant 1 : i32
    %49 = tpu.memref_slice %arg12[%c1_i32_29] : memref<2x!tpu.dma_semaphore, #tpu.memory_space<semaphore_mem>> -> memref<1x!tpu.dma_semaphore, #tpu.memory_space<semaphore_mem>>
    %50 = tpu.memref_squeeze %49 : memref<1x!tpu.dma_semaphore, #tpu.memory_space<semaphore_mem>> -> memref<!tpu.dma_semaphore, #tpu.memory_space<semaphore_mem>>
    tpu.wait_dma2 semaphore(%50 : memref<!tpu.dma_semaphore, #tpu.memory_space<semaphore_mem>>) src(%arg6 : memref<128x128xf32, #tpu.memory_space<any>>) dst(%arg11 : memref<128x128xf32, #tpu.memory_space<vmem>>)
    %c0_30 = arith.constant 0 : index
    %c0_31 = arith.constant 0 : index
    %51 = vector.load %arg10[%c0_30, %c0_31] : memref<128x128xf32, #tpu.memory_space<vmem>>, vector<128x128xf32>
    %cst_32 = arith.constant dense<0.000000e+00> : vector<1x128xf32>
    %52 = tpu.matmul %45, %51, %cst_32 {dimension_numbers = #tpu.dot_dimension_numbers<[1], [0], [0], [1], [0, 0, 1, 1], [], []>} : vector<1x128xf32>, vector<128x128xf32>, vector<1x128xf32> -> vector<1x128xf32>
    %c0_33 = arith.constant 0 : index
    %c0_34 = arith.constant 0 : index
    %53 = vector.load %arg11[%c0_33, %c0_34] : memref<128x128xf32, #tpu.memory_space<vmem>>, vector<128x128xf32>
    %cst_35 = arith.constant dense<0.000000e+00> : vector<1x128xf32>
    %54 = tpu.matmul %46, %53, %cst_35 {dimension_numbers = #tpu.dot_dimension_numbers<[1], [0], [0], [1], [0, 0, 1, 1], [], []>} : vector<1x128xf32>, vector<128x128xf32>, vector<1x128xf32> -> vector<1x128xf32>
    %55 = arith.addf %52, %54 : vector<1x128xf32>
    %c0_36 = arith.constant 0 : index
    %c0_37 = arith.constant 0 : index
    %56 = vector.load %arg7[%c0_36, %c0_37] : memref<1x128xf32, #tpu.memory_space<vmem>>, vector<1x128xf32>
    %57 = arith.addf %55, %56 : vector<1x128xf32>
    %cst_38 = arith.constant dense<0xFF800000> : vector<1xf32>
    %58 = vector.multi_reduction <maximumf>, %57, %cst_38 [1] : vector<1x128xf32> to vector<1xf32>
    %59 = vector.shape_cast %58 : vector<1xf32> to vector<1x1xf32>
    %60 = vector.broadcast %59 : vector<1x1xf32> to vector<1x128xf32>
    %61 = arith.subf %57, %60 : vector<1x128xf32>
    %62 = math.exp %61 : vector<1x128xf32>
    %cst_39 = arith.constant dense<0.000000e+00> : vector<1xf32>
    %63 = vector.multi_reduction <add>, %62, %cst_39 [1] : vector<1x128xf32> to vector<1xf32>
    %64 = vector.shape_cast %63 : vector<1xf32> to vector<1x1xf32>
    %65 = math.log %64 : vector<1x1xf32>
    %66 = arith.addf %65, %59 : vector<1x1xf32>
    %67 = vector.broadcast %66 : vector<1x1xf32> to vector<1x128xf32>
    %68 = arith.subf %57, %67 : vector<1x128xf32>
    %c0_40 = arith.constant 0 : index
    %c0_41 = arith.constant 0 : index
    %69 = vector.load %arg8[%c0_40, %c0_41] : memref<1x128xf32, #tpu.memory_space<vmem>>, vector<1x128xf32>
    tpu.vector_store %arg8[%c0_40, %c0_41], %68 {strides = array<i32>} : memref<1x128xf32, #tpu.memory_space<vmem>>, vector<1x128xf32>,
    return
  }
}

</mosaic_0001>

<llo_original>
// kernel: tpu_custom_call.1
$region0: #{tpu_custom_call.1}
  #allocation0 [shape = 'u32[]', space=smem, size = 0x4, offset = 0x4, fixed_abs, tag = 'smem constant byte address 0x4 - core index']
  #allocation1 [shape = 'u32[144,128]{1,0:T(1,128)}', space=vmem, size = 0x12000, scoped, tag = 'internal scratch']
  #allocation2 [shape = 'f32[16,128]{1,0:T(8,128)}', space=vmem, size = 0x2000, scoped, tag = 'scratch operand']
  #allocation3 [shape = 'f32[128,128]{1,0:T(8,128)}', space=vmem, size = 0x10000, scoped, tag = 'scratch operand']
  #allocation4 [shape = 'f32[128,128]{1,0:T(8,128)}', space=vmem, size = 0x10000, scoped, tag = 'scratch operand']
  #allocation5 [shape = 's32[2]{0}', space=sflag, size = 0x8, scoped, tag = 'scratch operand']
  #allocation13 [shape = 's32[]', space=sflag, size = 0x4, offset = 0, fixed_abs, tag = 'sflag constant byte address 0x0 - dummy sync flag']
  #allocation14 [shape = 's32[]', space=sflag, size = 0x4, offset = 0, fixed_abs, tag = 'sflag constant byte address 0x0 - dummy sync flag']
  #allocation15 [shape = 'u32[]', space=smem, size = 0x4, offset = 0x44, fixed_abs, tag = 'smem constant byte address 0x44 - assertion arg 0']
  #allocation16 [shape = 'u32[]', space=smem, size = 0x4, offset = 0x48, fixed_abs, tag = 'smem constant byte address 0x48 - assertion arg 1']
  #allocation17 [shape = 's32[]', space=sflag, size = 0x4, offset = 0, fixed_abs, tag = 'sflag constant byte address 0x0 - dummy sync flag']
  #allocation18 [shape = 's32[]', space=sflag, size = 0x4, offset = 0, fixed_abs, tag = 'sflag constant byte address 0x0 - dummy sync flag']
  %s0 = inlined_call_operand.hbm [shape: f32[16,16], index: 0, kind: input, shape index: {}]
  %s1 = inlined_call_operand.hbm [shape: f32[16,128], index: 1, kind: input, shape index: {}]
  %s2 = inlined_call_operand.hbm [shape: f32[128,128], index: 2, kind: input, shape index: {}]
  %s3 = inlined_call_operand.vmem [shape: f32[1,128], index: 3, kind: input, shape index: {}]
  %s4 = inlined_call_operand.vmem [shape: f32[2,128], index: 4, kind: input, shape index: {}]
  %s5 = inlined_call_operand.hbm [shape: f32[128,128], index: 5, kind: input, shape index: {}]
  %s6 = inlined_call_operand.hbm [shape: f32[128,128], index: 6, kind: input, shape index: {}]
  %s7 = inlined_call_operand.vmem [shape: f32[1,128], index: 7, kind: input, shape index: {}]
  %s8 = inlined_call_operand.hbm [shape: f32[1,128], index: 8, kind: output, shape index: {}]
  %s9 = sld [smem:[#allocation0]]
  $region54: #{tpu_custom_call.1} parent=0
    _
  %s11 = ssub.s32 1, %s9
  %s12 = scalar_select 0, %s11, %s9
  $region1: #{tpu_custom_call.1} parent=0
    #allocation6 [shape = 'u8[8192]{0}', space=vmem, size = 0x2000, scoped, tag = 'input window, operand 0, single buffered']
    #allocation7 [shape = 's32[1]{0}', space=sflag, size = 0x4, scoped, tag = 'scoped memory for tpu_custom_call.1']
    #allocation8 [shape = 's32[1]{0}', space=sflag, size = 0x4, scoped, tag = 'scoped memory for tpu_custom_call.1']
    #allocation9 [shape = 'u8[8192]{0}', space=vmem, size = 0x2000, scoped, tag = 'input window, operand 1, single buffered']
    #allocation10 [shape = 's32[1]{0}', space=sflag, size = 0x4, scoped, tag = 'scoped memory for tpu_custom_call.1']
    #allocation11 [shape = 'u8[65536]{0}', space=vmem, size = 0x10000, scoped, tag = 'input window, operand 2, single buffered']
    #allocation12 [shape = 'u8[512]{0}', space=vmem, size = 0x400, scoped, tag = 'output window, operand 0, single buffered']
    %13 = vsyncpa [#allocation7], 0
    %14 = vsyncpa [#allocation10], 0
    %15 = vsyncpa [#allocation8], 0
    // Predicated region
    $region2: #{tpu_custom_call.1} parent=1 // pred_check
      _
    $region3: #{tpu_custom_call.1} parent=1 // pred_check_branch
      %17 = sbr.rel (0) target = $region5
    $region4: #{tpu_custom_call.1} parent=1 // pred_region
      %s19 = ssub.s32 256, 256
      %20 = vsyncadd [#allocation7], %s19
      %s21 = sshll.u32 [#allocation6], 4
      %s22 = int_to_ptr.vmem [resolvable:$true] %s21
      %27 = dma.hbm_to_vmem [thread:$0]  %s0, 256, %s22, [#allocation7], 128, 128, 8
    $region5: #{tpu_custom_call.1} parent=1 // pred_fallthru
      _
    // Predicated region
    $region6: #{tpu_custom_call.1} parent=1 // pred_check
      _
    $region7: #{tpu_custom_call.1} parent=1 // pred_check_branch
      %29 = sbr.rel (0) target = $region9
    $region8: #{tpu_custom_call.1} parent=1 // pred_region
      %s31 = ssub.s32 256, 256
      %32 = vsyncadd [#allocation10], %s31
      %s33 = sshll.u32 [#allocation9], 4
      %s34 = int_to_ptr.vmem [resolvable:$true] %s33
      %39 = dma.hbm_to_vmem [thread:$0]  %s1, 256, %s34, [#allocation10], 128, 128, 8
    $region9: #{tpu_custom_call.1} parent=1 // pred_fallthru
      _
    // Predicated region
    $region10: #{tpu_custom_call.1} parent=1 // pred_check
      _
    $region11: #{tpu_custom_call.1} parent=1 // pred_check_branch
      %41 = sbr.rel (0) target = $region13
    $region12: #{tpu_custom_call.1} parent=1 // pred_region
      %s43 = ssub.s32 2048, 2048
      %44 = vsyncadd [#allocation10], %s43
      %s45 = sshll.u32 [#allocation11], 4
      %s46 = int_to_ptr.vmem [resolvable:$true] %s45
      %51 = dma.hbm_to_vmem [thread:$0]  %s2, 2048, %s46, [#allocation10], 128, 128, 8
    $region13: #{tpu_custom_call.1} parent=1 // pred_fallthru
      _
    // Predicated region
    $region14: #{tpu_custom_call.1} parent=1 // pred_check
      _
    $region15: #{tpu_custom_call.1} parent=1 // pred_check_branch
      %53 = sbr.rel (0) target = $region17
    $region16: #{tpu_custom_call.1} parent=1 // pred_region
      _
    $region17: #{tpu_custom_call.1} parent=1 // pred_fallthru
      _
    // Predicated region
    $region18: #{tpu_custom_call.1} parent=1 // pred_check
      _
    $region19: #{tpu_custom_call.1} parent=1 // pred_check_branch
      %55 = sbr.rel (0) target = $region21
    $region20: #{tpu_custom_call.1} parent=1 // pred_region
      _
    $region21: #{tpu_custom_call.1} parent=1 // pred_fallthru
      _
    // Predicated region
    $region22: #{tpu_custom_call.1} parent=1 // pred_check
      _
    $region23: #{tpu_custom_call.1} parent=1 // pred_check_branch
      %57 = sbr.rel (0) target = $region25
    $region24: #{tpu_custom_call.1} parent=1 // pred_region
      _
    $region25: #{tpu_custom_call.1} parent=1 // pred_fallthru
      _
    // Predicated region
    $region26: #{tpu_custom_call.1} parent=1 // pred_check
      _
    $region27: #{tpu_custom_call.1} parent=1 // pred_check_branch
      %59 = sbr.rel (0) target = $region29
    $region28: #{tpu_custom_call.1} parent=1 // pred_region
      %60 = dma.done [#allocation7], 256
    $region29: #{tpu_custom_call.1} parent=1 // pred_fallthru
      _
    // Predicated region
    $region30: #{tpu_custom_call.1} parent=1 // pred_check
      _
    $region31: #{tpu_custom_call.1} parent=1 // pred_check_branch
      %62 = sbr.rel (0) target = $region33
    $region32: #{tpu_custom_call.1} parent=1 // pred_region
      %63 = dma.done [#allocation10], 256
    $region33: #{tpu_custom_call.1} parent=1 // pred_fallthru
      _
    // Predicated region
    $region34: #{tpu_custom_call.1} parent=1 // pred_check
      _
    $region35: #{tpu_custom_call.1} parent=1 // pred_check_branch
      %65 = sbr.rel (0) target = $region37
    $region36: #{tpu_custom_call.1} parent=1 // pred_region
      %66 = dma.done [#allocation10], 2048
    $region37: #{tpu_custom_call.1} parent=1 // pred_fallthru
      _
    // Predicated region
    $region38: #{tpu_custom_call.1} parent=1 // pred_check
      _
    $region39: #{tpu_custom_call.1} parent=1 // pred_check_branch
      %68 = sbr.rel target = $region41
    $region40: #{tpu_custom_call.1} parent=1 // pred_region
      %69 = sst [smem:[#allocation15]] [#allocation14]
      %70 = sst [smem:[#allocation16]] [#allocation13]
    $region41: #{tpu_custom_call.1} parent=1 // pred_fallthru
      _
    %72 = shalt.err (0)
    %s74 = sshll.u32 [#allocation3], 4
    %s75 = int_to_ptr.vmem [resolvable:$true] %s74
    %77 = dma.hbm_to_vmem [thread:$0]  %s5, 2048, %s75, [#allocation5]
    %s78 = scalar_lea.sflag [#allocation5], 1
    // Predicated region
    $region42: #{tpu_custom_call.1} parent=1 // pred_check
      _
    $region43: #{tpu_custom_call.1} parent=1 // pred_check_branch
      %80 = sbr.rel target = $region45
    $region44: #{tpu_custom_call.1} parent=1 // pred_region
      %81 = sst [smem:[#allocation15]] [#allocation18]
      %82 = sst [smem:[#allocation16]] [#allocation17]
    $region45: #{tpu_custom_call.1} parent=1 // pred_fallthru
      _
    %84 = shalt.err (0)
    %s86 = sshll.u32 [#allocation4], 4
    %s87 = int_to_ptr.vmem [resolvable:$true] %s86
    %89 = dma.hbm_to_vmem [thread:$0]  %s6, 2048, %s87, %s78
    %v90 = vld [vmem:[#allocation11] sm:$0xff]
    %v91 = vld [vmem:[#allocation11 + $0x8] sm:$0xff]
    %v92 = vld [vmem:[#allocation11 + $0x10] sm:$0xff]
    %v93 = vld [vmem:[#allocation11 + $0x18] sm:$0xff]
    %v94 = vld [vmem:[#allocation11 + $0x20] sm:$0xff]
    %v95 = vld [vmem:[#allocation11 + $0x28] sm:$0xff]
    %v96 = vld [vmem:[#allocation11 + $0x30] sm:$0xff]
    %v97 = vld [vmem:[#allocation11 + $0x38] sm:$0xff]
    %v98 = vld [vmem:[#allocation11 + $0x40] sm:$0xff]
    %v99 = vld [vmem:[#allocation11 + $0x48] sm:$0xff]
    %v100 = vld [vmem:[#allocation11 + $0x50] sm:$0xff]
    %v101 = vld [vmem:[#allocation11 + $0x58] sm:$0xff]
    %v102 = vld [vmem:[#allocation11 + $0x60] sm:$0xff]
    %v103 = vld [vmem:[#allocation11 + $0x68] sm:$0xff]
    %v104 = vld [vmem:[#allocation11 + $0x70] sm:$0xff]
    %v105 = vld [vmem:[#allocation11 + $0x78] sm:$0xff]
    %v106 = vld [vmem:[#allocation6] sm:$0xff]
    %v107 = vld [vmem:[#allocation6 + $0x8] sm:$0xff]
    %v108 = vld [vmem:[#allocation9] sm:$0xff]
    %v109 = vld [vmem:[#allocation9 + $0x8] sm:$0xff]
    %v110 = vld [vmem:[%s3] sm:$0x1]
    %v112 = vlaneseq
    %v113 = vshrl.u32 %v112, 7
    %v114 = vsub.s32 0, %v113
    %v115 = vrot.slane %v110, %v114
    %vm117 = vcmask 130048
    %v119 = vsel %vm117, %v106, 0
    %v122 = vsel %vm117, %v107, 0
    %124 = vmatprep.subr.mxu0 0.0
    %125 = vmatpush1.msra.mxu0 %v108
    %126 = vmatprep.subr.mxu0 0.0
    %127 = vmatpush1.msra.mxu0 %v109
    %128 = vmatprep.subr.mxu0 0.0
    %129 = vmatpush1.msra.mxu0 0.0
    %130 = vmatprep.subr.mxu0 0.0
    %131 = vmatpush1.msra.mxu0 0.0
    %132 = vmatprep.subr.mxu0 0.0
    %133 = vmatpush1.msra.mxu0 0.0
    %134 = vmatprep.subr.mxu0 0.0
    %135 = vmatpush1.msra.mxu0 0.0
    %136 = vmatprep.subr.mxu0 0.0
    %137 = vmatpush1.msra.mxu0 0.0
    %138 = vmatprep.subr.mxu0 0.0
    %139 = vmatpush1.msra.mxu0 0.0
    %140 = vmatprep.subr.mxu0 0.0
    %141 = vmatpush1.msra.mxu0 0.0
    %142 = vmatprep.subr.mxu0 0.0
    %143 = vmatpush1.msra.mxu0 0.0
    %144 = vmatprep.subr.mxu0 0.0
    %145 = vmatpush1.msra.mxu0 0.0
    %146 = vmatprep.subr.mxu0 0.0
    %147 = vmatpush1.msra.mxu0 0.0
    %148 = vmatprep.subr.mxu0 0.0
    %149 = vmatpush1.msra.mxu0 0.0
    %150 = vmatprep.subr.mxu0 0.0
    %151 = vmatpush1.msra.mxu0 0.0
    %152 = vmatprep.subr.mxu0 0.0
    %153 = vmatpush1.msra.mxu0 0.0
    %154 = vmatprep.subr.mxu0 0.0
    %155 = vmatpush1.msra.mxu0 0.0
    %156 = vmatprep.subr.mxu0 0.0
    %157 = vmatpush1.msra.mxu0 0.0
    %158 = vmatprep.subr.mxu0 0.0
    %159 = vmatpush1.msra.mxu0 0.0
    %160 = vmatprep.subr.mxu0 0.0
    %161 = vmatpush1.msra.mxu0 0.0
    %162 = vmatprep.subr.mxu0 0.0
    %163 = vmatpush1.msra.mxu0 0.0
    %164 = vmatprep.subr.mxu0 0.0
    %165 = vmatpush1.msra.mxu0 0.0
    %166 = vmatprep.subr.mxu0 0.0
    %167 = vmatpush1.msra.mxu0 0.0
    %168 = vmatprep.subr.mxu0 0.0
    %169 = vmatpush1.msra.mxu0 0.0
    %170 = vmatprep.subr.mxu0 0.0
    %171 = vmatpush1.msra.mxu0 0.0
    %172 = vmatprep.subr.mxu0 0.0
    %173 = vmatpush1.msra.mxu0 0.0
    %174 = vmatprep.subr.mxu0 0.0
    %175 = vmatpush1.msra.mxu0 0.0
    %176 = vmatprep.subr.mxu0 0.0
    %177 = vmatpush1.msra.mxu0 0.0
    %178 = vmatprep.subr.mxu0 0.0
    %179 = vmatpush1.msra.mxu0 0.0
    %180 = vmatprep.subr.mxu0 0.0
    %181 = vmatpush1.msra.mxu0 0.0
    %182 = vmatprep.subr.mxu0 0.0
    %183 = vmatpush1.msra.mxu0 0.0
    %184 = vmatprep.subr.mxu0 0.0
    %185 = vmatpush1.msra.mxu0 0.0
    %186 = vmatprep.subr.mxu0 0.0
    %187 = vmatpush1.msra.mxu0 0.0
    %188 = vmatprep.mubr.f32.mxu0 0.0
    %189 = vmatmul.mubr.f32.gmra.mrb[0].mxu0 %v119
    %v190 = vpop.f32.mrb[0].mxu0
    %v191 = vadd.f32 %v115, %v190
    %v192 = vpop.f32.mrb[0].mxu0
    %193 = vmatprep.mubr.f32.mxu0 0.0
    %194 = vmatmul.mubr.f32.gmra.mrb[0].mxu0 %v122
    %v195 = vpop.f32.mrb[0].mxu0
    %v196 = vadd.f32 %v115, %v195
    %v197 = vpop.f32.mrb[0].mxu0
    %198 = vdwg.mxu0
    %199 = vst [vmem:[#allocation2] sm:$0xff] %v191
    %200 = vst [vmem:[#allocation2 + $0x8] sm:$0xff] %v196
    %v201 = vld [vmem:[%s4] sm:$0x3]
    %v202 = vld [vmem:[#allocation2] sm:$0x3]
    %203 = vmatprep.subr.mxu0 0.0
    %204 = vmatpush1.msra.mxu0 %v90
    %205 = vmatprep.subr.mxu0 0.0
    %206 = vmatpush1.msra.mxu0 %v91
    %207 = vmatprep.subr.mxu0 0.0
    %208 = vmatpush1.msra.mxu0 %v92
    %209 = vmatprep.subr.mxu0 0.0
    %210 = vmatpush1.msra.mxu0 %v93
    %211 = vmatprep.subr.mxu0 0.0
    %212 = vmatpush1.msra.mxu0 %v94
    %213 = vmatprep.subr.mxu0 0.0
    %214 = vmatpush1.msra.mxu0 %v95
    %215 = vmatprep.subr.mxu0 0.0
    %216 = vmatpush1.msra.mxu0 %v96
    %217 = vmatprep.subr.mxu0 0.0
    %218 = vmatpush1.msra.mxu0 %v97
    %219 = vmatprep.subr.mxu0 0.0
    %220 = vmatpush1.msra.mxu0 %v98
    %221 = vmatprep.subr.mxu0 0.0
    %222 = vmatpush1.msra.mxu0 %v99
    %223 = vmatprep.subr.mxu0 0.0
    %224 = vmatpush1.msra.mxu0 %v100
    %225 = vmatprep.subr.mxu0 0.0
    %226 = vmatpush1.msra.mxu0 %v101
    %227 = vmatprep.subr.mxu0 0.0
    %228 = vmatpush1.msra.mxu0 %v102
    %229 = vmatprep.subr.mxu0 0.0
    %230 = vmatpush1.msra.mxu0 %v103
    %231 = vmatprep.subr.mxu0 0.0
    %232 = vmatpush1.msra.mxu0 %v104
    %233 = vmatprep.subr.mxu0 0.0
    %234 = vmatpush1.msra.mxu0 %v105
    %235 = vmatprep.subr.mxu0 0.0
    %236 = vmatpush1.msra.mxu0 0.0
    %237 = vmatprep.subr.mxu0 0.0
    %238 = vmatpush1.msra.mxu0 0.0
    %239 = vmatprep.subr.mxu0 0.0
    %240 = vmatpush1.msra.mxu0 0.0
    %241 = vmatprep.subr.mxu0 0.0
    %242 = vmatpush1.msra.mxu0 0.0
    %243 = vmatprep.subr.mxu0 0.0
    %244 = vmatpush1.msra.mxu0 0.0
    %245 = vmatprep.subr.mxu0 0.0
    %246 = vmatpush1.msra.mxu0 0.0
    %247 = vmatprep.subr.mxu0 0.0
    %248 = vmatpush1.msra.mxu0 0.0
    %249 = vmatprep.subr.mxu0 0.0
    %250 = vmatpush1.msra.mxu0 0.0
    %251 = vmatprep.subr.mxu0 0.0
    %252 = vmatpush1.msra.mxu0 0.0
    %253 = vmatprep.subr.mxu0 0.0
    %254 = vmatpush1.msra.mxu0 0.0
    %255 = vmatprep.subr.mxu0 0.0
    %256 = vmatpush1.msra.mxu0 0.0
    %257 = vmatprep.subr.mxu0 0.0
    %258 = vmatpush1.msra.mxu0 0.0
    %259 = vmatprep.subr.mxu0 0.0
    %260 = vmatpush1.msra.mxu0 0.0
    %261 = vmatprep.subr.mxu0 0.0
    %262 = vmatpush1.msra.mxu0 0.0
    %263 = vmatprep.subr.mxu0 0.0
    %264 = vmatpush1.msra.mxu0 0.0
    %265 = vmatprep.subr.mxu0 0.0
    %266 = vmatpush1.msra.mxu0 0.0
    %267 = vmatprep.mubr.f32.mxu0 0.0
    %268 = vmatmul.mubr.f32.gmra.mrb[0].mxu0 %v201
    %v269 = vpop.f32.mrb[0].mxu0
    %v270 = vadd.f32 0.0, %v269
    %v271 = vpop.f32.mrb[0].mxu0
    %272 = vdwg.mxu0
    %v273 = vadd.f32 %v202, %v270
    %v274 = vtanh.pop %v273
    %v275 = vld [vmem:[#allocation2 + $0x2] sm:$0x3]
    %276 = vmatprep.subr.mxu0 0.0
    %277 = vmatpush1.msra.mxu0 %v90
    %278 = vmatprep.subr.mxu0 0.0
    %279 = vmatpush1.msra.mxu0 %v91
    %280 = vmatprep.subr.mxu0 0.0
    %281 = vmatpush1.msra.mxu0 %v92
    %282 = vmatprep.subr.mxu0 0.0
    %283 = vmatpush1.msra.mxu0 %v93
    %284 = vmatprep.subr.mxu0 0.0
    %285 = vmatpush1.msra.mxu0 %v94
    %286 = vmatprep.subr.mxu0 0.0
    %287 = vmatpush1.msra.mxu0 %v95
    %288 = vmatprep.subr.mxu0 0.0
    %289 = vmatpush1.msra.mxu0 %v96
    %290 = vmatprep.subr.mxu0 0.0
    %291 = vmatpush1.msra.mxu0 %v97
    %292 = vmatprep.subr.mxu0 0.0
    %293 = vmatpush1.msra.mxu0 %v98
    %294 = vmatprep.subr.mxu0 0.0
    %295 = vmatpush1.msra.mxu0 %v99
    %296 = vmatprep.subr.mxu0 0.0
    %297 = vmatpush1.msra.mxu0 %v100
    %298 = vmatprep.subr.mxu0 0.0
    %299 = vmatpush1.msra.mxu0 %v101
    %300 = vmatprep.subr.mxu0 0.0
    %301 = vmatpush1.msra.mxu0 %v102
    %302 = vmatprep.subr.mxu0 0.0
    %303 = vmatpush1.msra.mxu0 %v103
    %304 = vmatprep.subr.mxu0 0.0
    %305 = vmatpush1.msra.mxu0 %v104
    %306 = vmatprep.subr.mxu0 0.0
    %307 = vmatpush1.msra.mxu0 %v105
    %308 = vmatprep.subr.mxu0 0.0
    %309 = vmatpush1.msra.mxu0 0.0
    %310 = vmatprep.subr.mxu0 0.0
    %311 = vmatpush1.msra.mxu0 0.0
    %312 = vmatprep.subr.mxu0 0.0
    %313 = vmatpush1.msra.mxu0 0.0
    %314 = vmatprep.subr.mxu0 0.0
    %315 = vmatpush1.msra.mxu0 0.0
    %316 = vmatprep.subr.mxu0 0.0
    %317 = vmatpush1.msra.mxu0 0.0
    %318 = vmatprep.subr.mxu0 0.0
    %319 = vmatpush1.msra.mxu0 0.0
    %320 = vmatprep.subr.mxu0 0.0
    %321 = vmatpush1.msra.mxu0 0.0
    %322 = vmatprep.subr.mxu0 0.0
    %323 = vmatpush1.msra.mxu0 0.0
    %324 = vmatprep.subr.mxu0 0.0
    %325 = vmatpush1.msra.mxu0 0.0
    %326 = vmatprep.subr.mxu0 0.0
    %327 = vmatpush1.msra.mxu0 0.0
    %328 = vmatprep.subr.mxu0 0.0
    %329 = vmatpush1.msra.mxu0 0.0
    %330 = vmatprep.subr.mxu0 0.0
    %331 = vmatpush1.msra.mxu0 0.0
    %332 = vmatprep.subr.mxu0 0.0
    %333 = vmatpush1.msra.mxu0 0.0
    %334 = vmatprep.subr.mxu0 0.0
    %335 = vmatpush1.msra.mxu0 0.0
    %336 = vmatprep.subr.mxu0 0.0
    %337 = vmatpush1.msra.mxu0 0.0
    %338 = vmatprep.subr.mxu0 0.0
    %339 = vmatpush1.msra.mxu0 0.0
    %340 = vmatprep.mubr.f32.mxu0 0.0
    %341 = vmatmul.mubr.f32.gmra.mrb[0].mxu0 %v274
    %v342 = vpop.f32.mrb[0].mxu0
    %v343 = vadd.f32 0.0, %v342
    %v344 = vpop.f32.mrb[0].mxu0
    %345 = vdwg.mxu0
    %v346 = vadd.f32 %v275, %v343
    %v347 = vtanh.pop %v346
    %v348 = vld [vmem:[#allocation2 + $0x4] sm:$0x3]
    %349 = vmatprep.subr.mxu0 0.0
    %350 = vmatpush1.msra.mxu0 %v90
    %351 = vmatprep.subr.mxu0 0.0
    %352 = vmatpush1.msra.mxu0 %v91
    %353 = vmatprep.subr.mxu0 0.0
    %354 = vmatpush1.msra.mxu0 %v92
    %355 = vmatprep.subr.mxu0 0.0
    %356 = vmatpush1.msra.mxu0 %v93
    %357 = vmatprep.subr.mxu0 0.0
    %358 = vmatpush1.msra.mxu0 %v94
    %359 = vmatprep.subr.mxu0 0.0
    %360 = vmatpush1.msra.mxu0 %v95
    %361 = vmatprep.subr.mxu0 0.0
    %362 = vmatpush1.msra.mxu0 %v96
    %363 = vmatprep.subr.mxu0 0.0
    %364 = vmatpush1.msra.mxu0 %v97
    %365 = vmatprep.subr.mxu0 0.0
    %366 = vmatpush1.msra.mxu0 %v98
    %367 = vmatprep.subr.mxu0 0.0
    %368 = vmatpush1.msra.mxu0 %v99
    %369 = vmatprep.subr.mxu0 0.0
    %370 = vmatpush1.msra.mxu0 %v100
    %371 = vmatprep.subr.mxu0 0.0
    %372 = vmatpush1.msra.mxu0 %v101
    %373 = vmatprep.subr.mxu0 0.0
    %374 = vmatpush1.msra.mxu0 %v102
    %375 = vmatprep.subr.mxu0 0.0
    %376 = vmatpush1.msra.mxu0 %v103
    %377 = vmatprep.subr.mxu0 0.0
    %378 = vmatpush1.msra.mxu0 %v104
    %379 = vmatprep.subr.mxu0 0.0
    %380 = vmatpush1.msra.mxu0 %v105
    %381 = vmatprep.subr.mxu0 0.0
    %382 = vmatpush1.msra.mxu0 0.0
    %383 = vmatprep.subr.mxu0 0.0
    %384 = vmatpush1.msra.mxu0 0.0
    %385 = vmatprep.subr.mxu0 0.0
    %386 = vmatpush1.msra.mxu0 0.0
    %387 = vmatprep.subr.mxu0 0.0
    %388 = vmatpush1.msra.mxu0 0.0
    %389 = vmatprep.subr.mxu0 0.0
    %390 = vmatpush1.msra.mxu0 0.0
    %391 = vmatprep.subr.mxu0 0.0
    %392 = vmatpush1.msra.mxu0 0.0
    %393 = vmatprep.subr.mxu0 0.0
    %394 = vmatpush1.msra.mxu0 0.0
    %395 = vmatprep.subr.mxu0 0.0
    %396 = vmatpush1.msra.mxu0 0.0
    %397 = vmatprep.subr.mxu0 0.0
    %398 = vmatpush1.msra.mxu0 0.0
    %399 = vmatprep.subr.mxu0 0.0
    %400 = vmatpush1.msra.mxu0 0.0
    %401 = vmatprep.subr.mxu0 0.0
    %402 = vmatpush1.msra.mxu0 0.0
    %403 = vmatprep.subr.mxu0 0.0
    %404 = vmatpush1.msra.mxu0 0.0
    %405 = vmatprep.subr.mxu0 0.0
    %406 = vmatpush1.msra.mxu0 0.0
    %407 = vmatprep.subr.mxu0 0.0
    %408 = vmatpush1.msra.mxu0 0.0
    %409 = vmatprep.subr.mxu0 0.0
    %410 = vmatpush1.msra.mxu0 0.0
    %411 = vmatprep.subr.mxu0 0.0
    %412 = vmatpush1.msra.mxu0 0.0
    %413 = vmatprep.mubr.f32.mxu0 0.0
    %414 = vmatmul.mubr.f32.gmra.mrb[0].mxu0 %v347
    %v415 = vpop.f32.mrb[0].mxu0
    %v416 = vadd.f32 0.0, %v415
    %v417 = vpop.f32.mrb[0].mxu0
    %418 = vdwg.mxu0
    %v419 = vadd.f32 %v348, %v416
    %v420 = vtanh.pop %v419
    %v421 = vld [vmem:[#allocation2 + $0x6] sm:$0x3]
    %422 = vmatprep.subr.mxu0 0.0
    %423 = vmatpush1.msra.mxu0 %v90
    %424 = vmatprep.subr.mxu0 0.0
    %425 = vmatpush1.msra.mxu0 %v91
    %426 = vmatprep.subr.mxu0 0.0
    %427 = vmatpush1.msra.mxu0 %v92
    %428 = vmatprep.subr.mxu0 0.0
    %429 = vmatpush1.msra.mxu0 %v93
    %430 = vmatprep.subr.mxu0 0.0
    %431 = vmatpush1.msra.mxu0 %v94
    %432 = vmatprep.subr.mxu0 0.0
    %433 = vmatpush1.msra.mxu0 %v95
    %434 = vmatprep.subr.mxu0 0.0
    %435 = vmatpush1.msra.mxu0 %v96
    %436 = vmatprep.subr.mxu0 0.0
    %437 = vmatpush1.msra.mxu0 %v97
    %438 = vmatprep.subr.mxu0 0.0
    %439 = vmatpush1.msra.mxu0 %v98
    %440 = vmatprep.subr.mxu0 0.0
    %441 = vmatpush1.msra.mxu0 %v99
    %442 = vmatprep.subr.mxu0 0.0
    %443 = vmatpush1.msra.mxu0 %v100
    %444 = vmatprep.subr.mxu0 0.0
    %445 = vmatpush1.msra.mxu0 %v101
    %446 = vmatprep.subr.mxu0 0.0
    %447 = vmatpush1.msra.mxu0 %v102
    %448 = vmatprep.subr.mxu0 0.0
    %449 = vmatpush1.msra.mxu0 %v103
    %450 = vmatprep.subr.mxu0 0.0
    %451 = vmatpush1.msra.mxu0 %v104
    %452 = vmatprep.subr.mxu0 0.0
    %453 = vmatpush1.msra.mxu0 %v105
    %454 = vmatprep.subr.mxu0 0.0
    %455 = vmatpush1.msra.mxu0 0.0
    %456 = vmatprep.subr.mxu0 0.0
    %457 = vmatpush1.msra.mxu0 0.0
    %458 = vmatprep.subr.mxu0 0.0
    %459 = vmatpush1.msra.mxu0 0.0
    %460 = vmatprep.subr.mxu0 0.0
    %461 = vmatpush1.msra.mxu0 0.0
    %462 = vmatprep.subr.mxu0 0.0
    %463 = vmatpush1.msra.mxu0 0.0
    %464 = vmatprep.subr.mxu0 0.0
    %465 = vmatpush1.msra.mxu0 0.0
    %466 = vmatprep.subr.mxu0 0.0
    %467 = vmatpush1.msra.mxu0 0.0
    %468 = vmatprep.subr.mxu0 0.0
    %469 = vmatpush1.msra.mxu0 0.0
    %470 = vmatprep.subr.mxu0 0.0
    %471 = vmatpush1.msra.mxu0 0.0
    %472 = vmatprep.subr.mxu0 0.0
    %473 = vmatpush1.msra.mxu0 0.0
    %474 = vmatprep.subr.mxu0 0.0
    %475 = vmatpush1.msra.mxu0 0.0
    %476 = vmatprep.subr.mxu0 0.0
    %477 = vmatpush1.msra.mxu0 0.0
    %478 = vmatprep.subr.mxu0 0.0
    %479 = vmatpush1.msra.mxu0 0.0
    %480 = vmatprep.subr.mxu0 0.0
    %481 = vmatpush1.msra.mxu0 0.0
    %482 = vmatprep.subr.mxu0 0.0
    %483 = vmatpush1.msra.mxu0 0.0
    %484 = vmatprep.subr.mxu0 0.0
    %485 = vmatpush1.msra.mxu0 0.0
    %486 = vmatprep.mubr.f32.mxu0 0.0
    %487 = vmatmul.mubr.f32.gmra.mrb[0].mxu0 %v420
    %v488 = vpop.f32.mrb[0].mxu0
    %v489 = vadd.f32 0.0, %v488
    %v490 = vpop.f32.mrb[0].mxu0
    %491 = vdwg.mxu0
    %v492 = vadd.f32 %v421, %v489
    %v493 = vtanh.pop %v492
    %v494 = vld [vmem:[#allocation2 + $0x8] sm:$0x3]
    %495 = vmatprep.subr.mxu0 0.0
    %496 = vmatpush1.msra.mxu0 %v90
    %497 = vmatprep.subr.mxu0 0.0
    %498 = vmatpush1.msra.mxu0 %v91
    %499 = vmatprep.subr.mxu0 0.0
    %500 = vmatpush1.msra.mxu0 %v92
    %501 = vmatprep.subr.mxu0 0.0
    %502 = vmatpush1.msra.mxu0 %v93
    %503 = vmatprep.subr.mxu0 0.0
    %504 = vmatpush1.msra.mxu0 %v94
    %505 = vmatprep.subr.mxu0 0.0
    %506 = vmatpush1.msra.mxu0 %v95
    %507 = vmatprep.subr.mxu0 0.0
    %508 = vmatpush1.msra.mxu0 %v96
    %509 = vmatprep.subr.mxu0 0.0
    %510 = vmatpush1.msra.mxu0 %v97
    %511 = vmatprep.subr.mxu0 0.0
    %512 = vmatpush1.msra.mxu0 %v98
    %513 = vmatprep.subr.mxu0 0.0
    %514 = vmatpush1.msra.mxu0 %v99
    %515 = vmatprep.subr.mxu0 0.0
    %516 = vmatpush1.msra.mxu0 %v100
    %517 = vmatprep.subr.mxu0 0.0
    %518 = vmatpush1.msra.mxu0 %v101
    %519 = vmatprep.subr.mxu0 0.0
    %520 = vmatpush1.msra.mxu0 %v102
    %521 = vmatprep.subr.mxu0 0.0
    %522 = vmatpush1.msra.mxu0 %v103
    %523 = vmatprep.subr.mxu0 0.0
    %524 = vmatpush1.msra.mxu0 %v104
    %525 = vmatprep.subr.mxu0 0.0
    %526 = vmatpush1.msra.mxu0 %v105
    %527 = vmatprep.subr.mxu0 0.0
    %528 = vmatpush1.msra.mxu0 0.0
    %529 = vmatprep.subr.mxu0 0.0
    %530 = vmatpush1.msra.mxu0 0.0
    %531 = vmatprep.subr.mxu0 0.0
    %532 = vmatpush1.msra.mxu0 0.0
    %533 = vmatprep.subr.mxu0 0.0
    %534 = vmatpush1.msra.mxu0 0.0
    %535 = vmatprep.subr.mxu0 0.0
    %536 = vmatpush1.msra.mxu0 0.0
    %537 = vmatprep.subr.mxu0 0.0
    %538 = vmatpush1.msra.mxu0 0.0
    %539 = vmatprep.subr.mxu0 0.0
    %540 = vmatpush1.msra.mxu0 0.0
    %541 = vmatprep.subr.mxu0 0.0
    %542 = vmatpush1.msra.mxu0 0.0
    %543 = vmatprep.subr.mxu0 0.0
    %544 = vmatpush1.msra.mxu0 0.0
    %545 = vmatprep.subr.mxu0 0.0
    %546 = vmatpush1.msra.mxu0 0.0
    %547 = vmatprep.subr.mxu0 0.0
    %548 = vmatpush1.msra.mxu0 0.0
    %549 = vmatprep.subr.mxu0 0.0
    %550 = vmatpush1.msra.mxu0 0.0
    %551 = vmatprep.subr.mxu0 0.0
    %552 = vmatpush1.msra.mxu0 0.0
    %553 = vmatprep.subr.mxu0 0.0
    %554 = vmatpush1.msra.mxu0 0.0
    %555 = vmatprep.subr.mxu0 0.0
    %556 = vmatpush1.msra.mxu0 0.0
    %557 = vmatprep.subr.mxu0 0.0
    %558 = vmatpush1.msra.mxu0 0.0
    %559 = vmatprep.mubr.f32.mxu0 0.0
    %560 = vmatmul.mubr.f32.gmra.mrb[0].mxu0 %v493
    %v561 = vpop.f32.mrb[0].mxu0
    %v562 = vadd.f32 0.0, %v561
    %v563 = vpop.f32.mrb[0].mxu0
    %564 = vdwg.mxu0
    %v565 = vadd.f32 %v494, %v562
    %v566 = vtanh.pop %v565
    %v567 = vld [vmem:[#allocation2 + $0xa] sm:$0x3]
    %568 = vmatprep.subr.mxu0 0.0
    %569 = vmatpush1.msra.mxu0 %v90
    %570 = vmatprep.subr.mxu0 0.0
    %571 = vmatpush1.msra.mxu0 %v91
    %572 = vmatprep.subr.mxu0 0.0
    %573 = vmatpush1.msra.mxu0 %v92
    %574 = vmatprep.subr.mxu0 0.0
    %575 = vmatpush1.msra.mxu0 %v93
    %576 = vmatprep.subr.mxu0 0.0
    %577 = vmatpush1.msra.mxu0 %v94
    %578 = vmatprep.subr.mxu0 0.0
    %579 = vmatpush1.msra.mxu0 %v95
    %580 = vmatprep.subr.mxu0 0.0
    %581 = vmatpush1.msra.mxu0 %v96
    %582 = vmatprep.subr.mxu0 0.0
    %583 = vmatpush1.msra.mxu0 %v97
    %584 = vmatprep.subr.mxu0 0.0
    %585 = vmatpush1.msra.mxu0 %v98
    %586 = vmatprep.subr.mxu0 0.0
    %587 = vmatpush1.msra.mxu0 %v99
    %588 = vmatprep.subr.mxu0 0.0
    %589 = vmatpush1.msra.mxu0 %v100
    %590 = vmatprep.subr.mxu0 0.0
    %591 = vmatpush1.msra.mxu0 %v101
    %592 = vmatprep.subr.mxu0 0.0
    %593 = vmatpush1.msra.mxu0 %v102
    %594 = vmatprep.subr.mxu0 0.0
    %595 = vmatpush1.msra.mxu0 %v103
    %596 = vmatprep.subr.mxu0 0.0
    %597 = vmatpush1.msra.mxu0 %v104
    %598 = vmatprep.subr.mxu0 0.0
    %599 = vmatpush1.msra.mxu0 %v105
    %600 = vmatprep.subr.mxu0 0.0
    %601 = vmatpush1.msra.mxu0 0.0
    %602 = vmatprep.subr.mxu0 0.0
    %603 = vmatpush1.msra.mxu0 0.0
    %604 = vmatprep.subr.mxu0 0.0
    %605 = vmatpush1.msra.mxu0 0.0
    %606 = vmatprep.subr.mxu0 0.0
    %607 = vmatpush1.msra.mxu0 0.0
    %608 = vmatprep.subr.mxu0 0.0
    %609 = vmatpush1.msra.mxu0 0.0
    %610 = vmatprep.subr.mxu0 0.0
    %611 = vmatpush1.msra.mxu0 0.0
    %612 = vmatprep.subr.mxu0 0.0
    %613 = vmatpush1.msra.mxu0 0.0
    %614 = vmatprep.subr.mxu0 0.0
    %615 = vmatpush1.msra.mxu0 0.0
    %616 = vmatprep.subr.mxu0 0.0
    %617 = vmatpush1.msra.mxu0 0.0
    %618 = vmatprep.subr.mxu0 0.0
    %619 = vmatpush1.msra.mxu0 0.0
    %620 = vmatprep.subr.mxu0 0.0
    %621 = vmatpush1.msra.mxu0 0.0
    %622 = vmatprep.subr.mxu0 0.0
    %623 = vmatpush1.msra.mxu0 0.0
    %624 = vmatprep.subr.mxu0 0.0
    %625 = vmatpush1.msra.mxu0 0.0
    %626 = vmatprep.subr.mxu0 0.0
    %627 = vmatpush1.msra.mxu0 0.0
    %628 = vmatprep.subr.mxu0 0.0
    %629 = vmatpush1.msra.mxu0 0.0
    %630 = vmatprep.subr.mxu0 0.0
    %631 = vmatpush1.msra.mxu0 0.0
    %632 = vmatprep.mubr.f32.mxu0 0.0
    %633 = vmatmul.mubr.f32.gmra.mrb[0].mxu0 %v566
    %v634 = vpop.f32.mrb[0].mxu0
    %v635 = vadd.f32 0.0, %v634
    %v636 = vpop.f32.mrb[0].mxu0
    %637 = vdwg.mxu0
    %v638 = vadd.f32 %v567, %v635
    %v639 = vtanh.pop %v638
    %v640 = vld [vmem:[#allocation2 + $0xc] sm:$0x3]
    %641 = vmatprep.subr.mxu0 0.0
    %642 = vmatpush1.msra.mxu0 %v90
    %643 = vmatprep.subr.mxu0 0.0
    %644 = vmatpush1.msra.mxu0 %v91
    %645 = vmatprep.subr.mxu0 0.0
    %646 = vmatpush1.msra.mxu0 %v92
    %647 = vmatprep.subr.mxu0 0.0
    %648 = vmatpush1.msra.mxu0 %v93
    %649 = vmatprep.subr.mxu0 0.0
    %650 = vmatpush1.msra.mxu0 %v94
    %651 = vmatprep.subr.mxu0 0.0
    %652 = vmatpush1.msra.mxu0 %v95
    %653 = vmatprep.subr.mxu0 0.0
    %654 = vmatpush1.msra.mxu0 %v96
    %655 = vmatprep.subr.mxu0 0.0
    %656 = vmatpush1.msra.mxu0 %v97
    %657 = vmatprep.subr.mxu0 0.0
    %658 = vmatpush1.msra.mxu0 %v98
    %659 = vmatprep.subr.mxu0 0.0
    %660 = vmatpush1.msra.mxu0 %v99
    %661 = vmatprep.subr.mxu0 0.0
    %662 = vmatpush1.msra.mxu0 %v100
    %663 = vmatprep.subr.mxu0 0.0
    %664 = vmatpush1.msra.mxu0 %v101
    %665 = vmatprep.subr.mxu0 0.0
    %666 = vmatpush1.msra.mxu0 %v102
    %667 = vmatprep.subr.mxu0 0.0
    %668 = vmatpush1.msra.mxu0 %v103
    %669 = vmatprep.subr.mxu0 0.0
    %670 = vmatpush1.msra.mxu0 %v104
    %671 = vmatprep.subr.mxu0 0.0
    %672 = vmatpush1.msra.mxu0 %v105
    %673 = vmatprep.subr.mxu0 0.0
    %674 = vmatpush1.msra.mxu0 0.0
    %675 = vmatprep.subr.mxu0 0.0
    %676 = vmatpush1.msra.mxu0 0.0
    %677 = vmatprep.subr.mxu0 0.0
    %678 = vmatpush1.msra.mxu0 0.0
    %679 = vmatprep.subr.mxu0 0.0
    %680 = vmatpush1.msra.mxu0 0.0
    %681 = vmatprep.subr.mxu0 0.0
    %682 = vmatpush1.msra.mxu0 0.0
    %683 = vmatprep.subr.mxu0 0.0
    %684 = vmatpush1.msra.mxu0 0.0
    %685 = vmatprep.subr.mxu0 0.0
    %686 = vmatpush1.msra.mxu0 0.0
    %687 = vmatprep.subr.mxu0 0.0
    %688 = vmatpush1.msra.mxu0 0.0
    %689 = vmatprep.subr.mxu0 0.0
    %690 = vmatpush1.msra.mxu0 0.0
    %691 = vmatprep.subr.mxu0 0.0
    %692 = vmatpush1.msra.mxu0 0.0
    %693 = vmatprep.subr.mxu0 0.0
    %694 = vmatpush1.msra.mxu0 0.0
    %695 = vmatprep.subr.mxu0 0.0
    %696 = vmatpush1.msra.mxu0 0.0
    %697 = vmatprep.subr.mxu0 0.0
    %698 = vmatpush1.msra.mxu0 0.0
    %699 = vmatprep.subr.mxu0 0.0
    %700 = vmatpush1.msra.mxu0 0.0
    %701 = vmatprep.subr.mxu0 0.0
    %702 = vmatpush1.msra.mxu0 0.0
    %703 = vmatprep.subr.mxu0 0.0
    %704 = vmatpush1.msra.mxu0 0.0
    %705 = vmatprep.mubr.f32.mxu0 0.0
    %706 = vmatmul.mubr.f32.gmra.mrb[0].mxu0 %v639
    %v707 = vpop.f32.mrb[0].mxu0
    %v708 = vadd.f32 0.0, %v707
    %v709 = vpop.f32.mrb[0].mxu0
    %710 = vdwg.mxu0
    %v711 = vadd.f32 %v640, %v708
    %v712 = vtanh.pop %v711
    %v713 = vld [vmem:[#allocation2 + $0xe] sm:$0x3]
    %714 = vmatprep.subr.mxu0 0.0
    %715 = vmatpush1.msra.mxu0 %v90
    %716 = vmatprep.subr.mxu0 0.0
    %717 = vmatpush1.msra.mxu0 %v91
    %718 = vmatprep.subr.mxu0 0.0
    %719 = vmatpush1.msra.mxu0 %v92
    %720 = vmatprep.subr.mxu0 0.0
    %721 = vmatpush1.msra.mxu0 %v93
    %722 = vmatprep.subr.mxu0 0.0
    %723 = vmatpush1.msra.mxu0 %v94
    %724 = vmatprep.subr.mxu0 0.0
    %725 = vmatpush1.msra.mxu0 %v95
    %726 = vmatprep.subr.mxu0 0.0
    %727 = vmatpush1.msra.mxu0 %v96
    %728 = vmatprep.subr.mxu0 0.0
    %729 = vmatpush1.msra.mxu0 %v97
    %730 = vmatprep.subr.mxu0 0.0
    %731 = vmatpush1.msra.mxu0 %v98
    %732 = vmatprep.subr.mxu0 0.0
    %733 = vmatpush1.msra.mxu0 %v99
    %734 = vmatprep.subr.mxu0 0.0
    %735 = vmatpush1.msra.mxu0 %v100
    %736 = vmatprep.subr.mxu0 0.0
    %737 = vmatpush1.msra.mxu0 %v101
    %738 = vmatprep.subr.mxu0 0.0
    %739 = vmatpush1.msra.mxu0 %v102
    %740 = vmatprep.subr.mxu0 0.0
    %741 = vmatpush1.msra.mxu0 %v103
    %742 = vmatprep.subr.mxu0 0.0
    %743 = vmatpush1.msra.mxu0 %v104
    %744 = vmatprep.subr.mxu0 0.0
    %745 = vmatpush1.msra.mxu0 %v105
    %746 = vmatprep.subr.mxu0 0.0
    %747 = vmatpush1.msra.mxu0 0.0
    %748 = vmatprep.subr.mxu0 0.0
    %749 = vmatpush1.msra.mxu0 0.0
    %750 = vmatprep.subr.mxu0 0.0
    %751 = vmatpush1.msra.mxu0 0.0
    %752 = vmatprep.subr.mxu0 0.0
    %753 = vmatpush1.msra.mxu0 0.0
    %754 = vmatprep.subr.mxu0 0.0
    %755 = vmatpush1.msra.mxu0 0.0
    %756 = vmatprep.subr.mxu0 0.0
    %757 = vmatpush1.msra.mxu0 0.0
    %758 = vmatprep.subr.mxu0 0.0
    %759 = vmatpush1.msra.mxu0 0.0
    %760 = vmatprep.subr.mxu0 0.0
    %761 = vmatpush1.msra.mxu0 0.0
    %762 = vmatprep.subr.mxu0 0.0
    %763 = vmatpush1.msra.mxu0 0.0
    %764 = vmatprep.subr.mxu0 0.0
    %765 = vmatpush1.msra.mxu0 0.0
    %766 = vmatprep.subr.mxu0 0.0
    %767 = vmatpush1.msra.mxu0 0.0
    %768 = vmatprep.subr.mxu0 0.0
    %769 = vmatpush1.msra.mxu0 0.0
    %770 = vmatprep.subr.mxu0 0.0
    %771 = vmatpush1.msra.mxu0 0.0
    %772 = vmatprep.subr.mxu0 0.0
    %773 = vmatpush1.msra.mxu0 0.0
    %774 = vmatprep.subr.mxu0 0.0
    %775 = vmatpush1.msra.mxu0 0.0
    %776 = vmatprep.subr.mxu0 0.0
    %777 = vmatpush1.msra.mxu0 0.0
    %778 = vmatprep.mubr.f32.mxu0 0.0
    %779 = vmatmul.mubr.f32.gmra.mrb[0].mxu0 %v712
    %v780 = vpop.f32.mrb[0].mxu0
    %v781 = vadd.f32 0.0, %v780
    %v782 = vpop.f32.mrb[0].mxu0
    %783 = vdwg.mxu0
    %v784 = vadd.f32 %v713, %v781
    %v785 = vtanh.pop %v784
    %s786 = smul.u32 128, 1
    %s787 = sshll.u32 %s786, 4
    %788 = dma.done [#allocation5], %s787
    %s789 = sshll.u32 %s786, 4
    %790 = dma.done %s78, %s789
    %v791 = vld [vmem:[#allocation3] sm:$0xff]
    %v792 = vld [vmem:[#allocation3 + $0x8] sm:$0xff]
    %v793 = vld [vmem:[#allocation3 + $0x10] sm:$0xff]
    %v794 = vld [vmem:[#allocation3 + $0x18] sm:$0xff]
    %v795 = vld [vmem:[#allocation3 + $0x20] sm:$0xff]
    %v796 = vld [vmem:[#allocation3 + $0x28] sm:$0xff]
    %v797 = vld [vmem:[#allocation3 + $0x30] sm:$0xff]
    %v798 = vld [vmem:[#allocation3 + $0x38] sm:$0xff]
    %v799 = vld [vmem:[#allocation3 + $0x40] sm:$0xff]
    %v800 = vld [vmem:[#allocation3 + $0x48] sm:$0xff]
    %v801 = vld [vmem:[#allocation3 + $0x50] sm:$0xff]
    %v802 = vld [vmem:[#allocation3 + $0x58] sm:$0xff]
    %v803 = vld [vmem:[#allocation3 + $0x60] sm:$0xff]
    %v804 = vld [vmem:[#allocation3 + $0x68] sm:$0xff]
    %v805 = vld [vmem:[#allocation3 + $0x70] sm:$0xff]
    %v806 = vld [vmem:[#allocation3 + $0x78] sm:$0xff]
    %v807 = vld [vmem:[#allocation4] sm:$0xff]
    %v808 = vld [vmem:[#allocation4 + $0x8] sm:$0xff]
    %v809 = vld [vmem:[#allocation4 + $0x10] sm:$0xff]
    %v810 = vld [vmem:[#allocation4 + $0x18] sm:$0xff]
    %v811 = vld [vmem:[#allocation4 + $0x20] sm:$0xff]
    %v812 = vld [vmem:[#allocation4 + $0x28] sm:$0xff]
    %v813 = vld [vmem:[#allocation4 + $0x30] sm:$0xff]
    %v814 = vld [vmem:[#allocation4 + $0x38] sm:$0xff]
    %v815 = vld [vmem:[#allocation4 + $0x40] sm:$0xff]
    %v816 = vld [vmem:[#allocation4 + $0x48] sm:$0xff]
    %v817 = vld [vmem:[#allocation4 + $0x50] sm:$0xff]
    %v818 = vld [vmem:[#allocation4 + $0x58] sm:$0xff]
    %v819 = vld [vmem:[#allocation4 + $0x60] sm:$0xff]
    %v820 = vld [vmem:[#allocation4 + $0x68] sm:$0xff]
    %v821 = vld [vmem:[#allocation4 + $0x70] sm:$0xff]
    %v822 = vld [vmem:[#allocation4 + $0x78] sm:$0xff]
    %v824 = vrot.slane %v785, 1
    %826 = vmatprep.subr.mxu0 0.0
    %827 = vmatpush1.msra.mxu0 %v807
    %828 = vmatprep.subr.mxu0 0.0
    %829 = vmatpush1.msra.mxu0 %v808
    %830 = vmatprep.subr.mxu0 0.0
    %831 = vmatpush1.msra.mxu0 %v809
    %832 = vmatprep.subr.mxu0 0.0
    %833 = vmatpush1.msra.mxu0 %v810
    %834 = vmatprep.subr.mxu0 0.0
    %835 = vmatpush1.msra.mxu0 %v811
    %836 = vmatprep.subr.mxu0 0.0
    %837 = vmatpush1.msra.mxu0 %v812
    %838 = vmatprep.subr.mxu0 0.0
    %839 = vmatpush1.msra.mxu0 %v813
    %840 = vmatprep.subr.mxu0 0.0
    %841 = vmatpush1.msra.mxu0 %v814
    %842 = vmatprep.subr.mxu0 0.0
    %843 = vmatpush1.msra.mxu0 %v815
    %844 = vmatprep.subr.mxu0 0.0
    %845 = vmatpush1.msra.mxu0 %v816
    %846 = vmatprep.subr.mxu0 0.0
    %847 = vmatpush1.msra.mxu0 %v817
    %848 = vmatprep.subr.mxu0 0.0
    %849 = vmatpush1.msra.mxu0 %v818
    %850 = vmatprep.subr.mxu0 0.0
    %851 = vmatpush1.msra.mxu0 %v819
    %852 = vmatprep.subr.mxu0 0.0
    %853 = vmatpush1.msra.mxu0 %v820
    %854 = vmatprep.subr.mxu0 0.0
    %855 = vmatpush1.msra.mxu0 %v821
    %856 = vmatprep.subr.mxu0 0.0
    %857 = vmatpush1.msra.mxu0 %v822
    %858 = vmatprep.subr.mxu0 0.0
    %859 = vmatpush1.msra.mxu0 0.0
    %860 = vmatprep.subr.mxu0 0.0
    %861 = vmatpush1.msra.mxu0 0.0
    %862 = vmatprep.subr.mxu0 0.0
    %863 = vmatpush1.msra.mxu0 0.0
    %864 = vmatprep.subr.mxu0 0.0
    %865 = vmatpush1.msra.mxu0 0.0
    %866 = vmatprep.subr.mxu0 0.0
    %867 = vmatpush1.msra.mxu0 0.0
    %868 = vmatprep.subr.mxu0 0.0
    %869 = vmatpush1.msra.mxu0 0.0
    %870 = vmatprep.subr.mxu0 0.0
    %871 = vmatpush1.msra.mxu0 0.0
    %872 = vmatprep.subr.mxu0 0.0
    %873 = vmatpush1.msra.mxu0 0.0
    %874 = vmatprep.subr.mxu0 0.0
    %875 = vmatpush1.msra.mxu0 0.0
    %876 = vmatprep.subr.mxu0 0.0
    %877 = vmatpush1.msra.mxu0 0.0
    %878 = vmatprep.subr.mxu0 0.0
    %879 = vmatpush1.msra.mxu0 0.0
    %880 = vmatprep.subr.mxu0 0.0
    %881 = vmatpush1.msra.mxu0 0.0
    %882 = vmatprep.subr.mxu0 0.0
    %883 = vmatpush1.msra.mxu0 0.0
    %884 = vmatprep.subr.mxu0 0.0
    %885 = vmatpush1.msra.mxu0 0.0
    %886 = vmatprep.subr.mxu0 0.0
    %887 = vmatpush1.msra.mxu0 0.0
    %888 = vmatprep.subr.mxu0 0.0
    %889 = vmatpush1.msra.mxu0 0.0
    %890 = vmatprep.mubr.f32.mxu0 0.0
    %891 = vmatmul.mubr.f32.gmra.mrb[0].mxu0 %v824
    %v892 = vpop.f32.mrb[0].mxu0
    %v893 = vadd.f32 0.0, %v892
    %v894 = vpop.f32.mrb[0].mxu0
    %895 = vdwg.mxu0
    %896 = vmatprep.subr.mxu0 0.0
    %897 = vmatpush1.msra.mxu0 %v791
    %898 = vmatprep.subr.mxu0 0.0
    %899 = vmatpush1.msra.mxu0 %v792
    %900 = vmatprep.subr.mxu0 0.0
    %901 = vmatpush1.msra.mxu0 %v793
    %902 = vmatprep.subr.mxu0 0.0
    %903 = vmatpush1.msra.mxu0 %v794
    %904 = vmatprep.subr.mxu0 0.0
    %905 = vmatpush1.msra.mxu0 %v795
    %906 = vmatprep.subr.mxu0 0.0
    %907 = vmatpush1.msra.mxu0 %v796
    %908 = vmatprep.subr.mxu0 0.0
    %909 = vmatpush1.msra.mxu0 %v797
    %910 = vmatprep.subr.mxu0 0.0
    %911 = vmatpush1.msra.mxu0 %v798
    %912 = vmatprep.subr.mxu0 0.0
    %913 = vmatpush1.msra.mxu0 %v799
    %914 = vmatprep.subr.mxu0 0.0
    %915 = vmatpush1.msra.mxu0 %v800
    %916 = vmatprep.subr.mxu0 0.0
    %917 = vmatpush1.msra.mxu0 %v801
    %918 = vmatprep.subr.mxu0 0.0
    %919 = vmatpush1.msra.mxu0 %v802
    %920 = vmatprep.subr.mxu0 0.0
    %921 = vmatpush1.msra.mxu0 %v803
    %922 = vmatprep.subr.mxu0 0.0
    %923 = vmatpush1.msra.mxu0 %v804
    %924 = vmatprep.subr.mxu0 0.0
    %925 = vmatpush1.msra.mxu0 %v805
    %926 = vmatprep.subr.mxu0 0.0
    %927 = vmatpush1.msra.mxu0 %v806
    %928 = vmatprep.subr.mxu0 0.0
    %929 = vmatpush1.msra.mxu0 0.0
    %930 = vmatprep.subr.mxu0 0.0
    %931 = vmatpush1.msra.mxu0 0.0
    %932 = vmatprep.subr.mxu0 0.0
    %933 = vmatpush1.msra.mxu0 0.0
    %934 = vmatprep.subr.mxu0 0.0
    %935 = vmatpush1.msra.mxu0 0.0
    %936 = vmatprep.subr.mxu0 0.0
    %937 = vmatpush1.msra.mxu0 0.0
    %938 = vmatprep.subr.mxu0 0.0
    %939 = vmatpush1.msra.mxu0 0.0
    %940 = vmatprep.subr.mxu0 0.0
    %941 = vmatpush1.msra.mxu0 0.0
    %942 = vmatprep.subr.mxu0 0.0
    %943 = vmatpush1.msra.mxu0 0.0
    %944 = vmatprep.subr.mxu0 0.0
    %945 = vmatpush1.msra.mxu0 0.0
    %946 = vmatprep.subr.mxu0 0.0
    %947 = vmatpush1.msra.mxu0 0.0
    %948 = vmatprep.subr.mxu0 0.0
    %949 = vmatpush1.msra.mxu0 0.0
    %950 = vmatprep.subr.mxu0 0.0
    %951 = vmatpush1.msra.mxu0 0.0
    %952 = vmatprep.subr.mxu0 0.0
    %953 = vmatpush1.msra.mxu0 0.0
    %954 = vmatprep.subr.mxu0 0.0
    %955 = vmatpush1.msra.mxu0 0.0
    %956 = vmatprep.subr.mxu0 0.0
    %957 = vmatpush1.msra.mxu0 0.0
    %958 = vmatprep.subr.mxu0 0.0
    %959 = vmatpush1.msra.mxu0 0.0
    %960 = vmatprep.mubr.f32.mxu0 0.0
    %961 = vmatmul.mubr.f32.gmra.mrb[0].mxu0 %v785
    %v962 = vpop.f32.mrb[0].mxu0
    %v963 = vadd.f32 %v893, %v962
    %v964 = vpop.f32.mrb[0].mxu0
    %965 = vdwg.mxu0
    %v966 = vld [vmem:[%s7] sm:$0x1]
    %v967 = vadd.f32 %v963, %v966
    %vm968 = vcmask 1040384
    %v969 = vsel %vm968, %v967, -inf
    %970 = vmax.xlane.f32.xlu0 %v969
    %v971 = vpop.xlane.xlu0 %970
    %v972 = vsub.f32 %v967, %v971
    %v973 = vmul.f32 %v972, 1.442695
    %v974 = vpow.pop %v973
    %v975 = vsel %vm968, %v974, 0.0
    %976 = vadd.xlane.f32.xlu0 %v975
    %v977 = vpop.xlane.xlu0 %976
    %v978 = vlog2.pop %v977
    %v979 = vmul.f32 %v978, 0.6931472
    %v980 = vadd.f32 %v979, %v971
    %v981 = vsub.f32 %v967, %v980
    %982 = vst [vmem:[#allocation12] sm:$0x1] %v981
    // Predicated region
    $region46: #{tpu_custom_call.1} parent=1 // pred_check
      _
    $region47: #{tpu_custom_call.1} parent=1 // pred_check_branch
      %984 = sbr.rel (0) target = $region49
    $region48: #{tpu_custom_call.1} parent=1 // pred_region
      %s986 = ssub.s32 16, 16
      %987 = vsyncadd [#allocation8], %s986
      %s989 = sshll.u32 [#allocation12], 4
      %s990 = int_to_ptr.vmem [resolvable:$true] %s989
      %992 = dma.vmem_to_hbm [thread:$0]  %s990, 16, %s8, [#allocation8]
    $region49: #{tpu_custom_call.1} parent=1 // pred_fallthru
      _
    // Predicated region
    $region50: #{tpu_custom_call.1} parent=1 // pred_check
      _
    $region51: #{tpu_custom_call.1} parent=1 // pred_check_branch
      %994 = sbr.rel (0) target = $region53
    $region52: #{tpu_custom_call.1} parent=1 // pred_region
      %995 = dma.done [#allocation8], 16
    $region53: #{tpu_custom_call.1} parent=1 // pred_fallthru
      _
    %996 = vsyncpa [#allocation7], 1
    %997 = vsyncpa [#allocation10], 1
    %998 = vsyncpa [#allocation8], 1
  %999 = vsyncmov [#allocation5]
  %s1000 = vpop.sfrf %999
  %p1001 = scmp.eq.s32.totalorder %s1000, 0
  %p1002 = pneg %p1001
  %1004 = shalt.err (%p1002)
  %s1005 = scalar_lea.sflag [#allocation5], 1
  %1006 = vsyncmov %s1005
  %s1007 = vpop.sfrf %1006
  %p1008 = scmp.eq.s32.totalorder %s1007, 0
  %p1009 = pneg %p1008
  %1011 = shalt.err (%p1009)

</llo_original>
